<compile_context>
chip_gen: v5e
topology: v5e:2x2
jax: 0.10.0
libtpu: 0.0.40
codegen_flags: <defaults>
</compile_context>

<pallas_src>
import functools

import jax
import jax.numpy as jnp
from jax.experimental import pallas as pl
from jax.experimental.pallas import tpu as pltpu


def se_kernel(x_ref, w1_ref, b1_ref, w2_ref, b2_ref, o_ref, *, inv_hw):
    # x_ref / o_ref block: (block_n, C, HW)  -- C on sublanes, HW on lanes.
    # w1: (C, Ch), b1: (1, Ch), w2: (Ch, C), b2: (1, C)  -- fully resident.
    x = x_ref[...]

    # Squeeze: f32-accumulated mean over the spatial (lane) axis for the whole
    # block at once.  No padded lanes exist, so the sum is exact and we divide
    # by the true HW.
    pooled = jnp.sum(x, axis=-1, dtype=jnp.float32) * inv_hw        # (bn, C)

    # Excitation: one batched matmul per FC across the whole block (instead of
    # block_n 1-column matvecs).
    w1 = w1_ref[...].astype(jnp.float32)
    b1 = b1_ref[...].astype(jnp.float32)
    w2 = w2_ref[...].astype(jnp.float32)
    b2 = b2_ref[...].astype(jnp.float32)

    z1 = jnp.dot(pooled, w1, preferred_element_type=jnp.float32) + b1
    z1 = jnp.maximum(z1, 0.0)                                        # (bn, Ch)
    z2 = jnp.dot(z1, w2, preferred_element_type=jnp.float32) + b2    # (bn, C)
    gate = jax.nn.sigmoid(z2)                                        # (bn, C)

    # Scale: per-(n, channel) gate broadcasts over the lane (HW) axis.
    # Elementwise multiply stays in the activation dtype to keep vreg pressure
    # flat for bf16 activations.
    o_ref[...] = (x * gate[:, :, None].astype(x.dtype)).astype(o_ref.dtype)


def se_block_pallas(x, w1, b1, w2, b2, *, block_n=None,
                    target_block_bytes=4 * 1024 * 1024):
    """x: (N, C, H, W). w1: (C, Ch), b1: (Ch,), w2: (Ch, C), b2: (C,)."""
    N, C, H, W = x.shape
    HW = H * W
    Ch = w1.shape[1]
    dtype = x.dtype
    itemsize = jnp.dtype(dtype).itemsize

    # Pick how many batch slices per grid step: big enough to amortize the
    # per-step overhead, small enough that double-buffered in+out blocks stay
    # well inside every generation's VMEM (incl. v7x's 64 MiB physical).
    if block_n is None:
        per_slice = C * HW * itemsize
        block_n = int(min(N, max(1, target_block_bytes // per_slice)))
    grid_n = pl.cdiv(N, block_n)

    # NCHW -> (N, C, HW): free reshape, no padding, no post-slice.  Any ragged
    # trailing batch block is handled by Pallas (per-row results of out-of-range
    # rows are simply dropped; rows are independent, so this is safe).
    x2 = x.reshape(N, C, HW)

    w1 = jnp.asarray(w1)                    # (C, Ch)
    w2 = jnp.asarray(w2)                    # (Ch, C)
    b1r = jnp.asarray(b1).reshape(1, Ch)
    b2r = jnp.asarray(b2).reshape(1, C)

    kernel = functools.partial(se_kernel, inv_hw=1.0 / HW)

    cost = pl.CostEstimate(
        flops=int(N * (2 * C * HW + 4 * C * Ch)),
        transcendentals=int(N * C),
        bytes_accessed=int(2 * N * C * HW * itemsize
                           + 2 * C * Ch * itemsize + (C + Ch) * itemsize),
    )

    out = pl.pallas_call(
        kernel,
        out_shape=jax.ShapeDtypeStruct((N, C, HW), dtype),
        grid=(grid_n,),
        in_specs=[
            pl.BlockSpec((block_n, C, HW), lambda i: (i, 0, 0)),  # x block
            pl.BlockSpec((C, Ch), lambda i: (0, 0)),              # w1
            pl.BlockSpec((1, Ch), lambda i: (0, 0)),              # b1
            pl.BlockSpec((Ch, C), lambda i: (0, 0)),              # w2
            pl.BlockSpec((1, C), lambda i: (0, 0)),               # b2
        ],
        out_specs=pl.BlockSpec((block_n, C, HW), lambda i: (i, 0, 0)),
        compiler_params=pltpu.CompilerParams(
            dimension_semantics=("parallel",),
            vmem_limit_bytes=48 * 1024 * 1024),
        cost_estimate=cost,
    )(x2, w1, b1r, w2, b2r)

    return out.reshape(N, C, H, W)


def se_block_ref(x, w1, b1, w2, b2):
    """Plain-JAX reference matching the PyTorch se_block.forward."""
    pooled = jnp.mean(x, axis=(2, 3))                      # (N, C)
    z1 = jnp.maximum(pooled @ w1 + b1, 0.0)                # (N, C/r)
    gate = jax.nn.sigmoid(z1 @ w2 + b2)                    # (N, C)
    return x * gate[:, :, None, None]


if __name__ == "__main__":
    # se_block(c=8, r=4) -> hidden = 2.  Spatial 14x14 = 196 exercises a
    # non-128-multiple lane extent (handled without padding since the block's
    # last dims equal the full array dims).
    N, C, H, W = 2, 8, 14, 14
    r = 4
    Ch = C // r

    key = jax.random.PRNGKey(0)
    kx, k1, k2, k3, k4 = jax.random.split(key, 5)

    x = jax.random.normal(kx, (N, C, H, W), dtype=jnp.float32)
    # Linear(c, c/r) and Linear(c/r, c) in "x @ W + b" convention.
    w1 = jax.random.normal(k1, (C, Ch), dtype=jnp.float32) * 0.1
    b1 = jax.random.normal(k2, (Ch,), dtype=jnp.float32) * 0.1
    w2 = jax.random.normal(k3, (Ch, C), dtype=jnp.float32) * 0.1
    b2 = jax.random.normal(k4, (C,), dtype=jnp.float32) * 0.1

    out = jax.block_until_ready(se_block_pallas(x, w1, b1, w2, b2))
    ref = se_block_ref(x, w1, b1, w2, b2)

    assert out.shape == (N, C, H, W)
    assert jnp.allclose(out, ref, atol=1e-5, rtol=1e-5), float(
        jnp.max(jnp.abs(out - ref)))

    print("KERNEL_OK")
</pallas_src>

<mosaic_0001>
module attributes {stable_mosaic.version = 11 : i64} {
  func.func @se_kernel(%arg0: i32, %arg1: memref<2x8x196xf32, #tpu.memory_space<vmem>>, %arg2: memref<8x2xf32, #tpu.memory_space<vmem>>, %arg3: memref<1x2xf32, #tpu.memory_space<vmem>>, %arg4: memref<2x8xf32, #tpu.memory_space<vmem>>, %arg5: memref<1x8xf32, #tpu.memory_space<vmem>>, %arg6: memref<2x8x196xf32, #tpu.memory_space<vmem>>) attributes {dimension_semantics = [#tpu.dimension_semantics<parallel>], iteration_bounds = array<i64: 1>, scalar_prefetch = 0 : i64, scratch_operands = 0 : i64, tpu.core_type = #tpu.core_type<tc>, window_params = [{transform_indices = @transform_0, window_bounds = array<i64: 2, 8, 196>}, {pipeline_mode = #tpu.pipeline_mode<synchronous>, transform_indices = @transform_1, window_bounds = array<i64: 8, 2>}, {pipeline_mode = #tpu.pipeline_mode<synchronous>, transform_indices = @transform_2, window_bounds = array<i64: 1, 2>}, {pipeline_mode = #tpu.pipeline_mode<synchronous>, transform_indices = @transform_3, window_bounds = array<i64: 2, 8>}, {pipeline_mode = #tpu.pipeline_mode<synchronous>, transform_indices = @transform_4, window_bounds = array<i64: 1, 8>}, {transform_indices = @transform_5, window_bounds = array<i64: 2, 8, 196>}]} {
    %c0 = arith.constant 0 : index
    %c0_0 = arith.constant 0 : index
    %c0_1 = arith.constant 0 : index
    %0 = vector.load %arg1[%c0, %c0_0, %c0_1] : memref<2x8x196xf32, #tpu.memory_space<vmem>>, vector<2x8x196xf32>
    %cst = arith.constant dense<0.000000e+00> : vector<2x8xf32>
    %1 = vector.multi_reduction <add>, %0, %cst [2] : vector<2x8x196xf32> to vector<2x8xf32>
    %cst_2 = arith.constant 0.00510204071 : f32
    %2 = vector.broadcast %cst_2 : f32 to vector<2x8xf32>
    %3 = arith.mulf %1, %2 : vector<2x8xf32>
    %c0_3 = arith.constant 0 : index
    %c0_4 = arith.constant 0 : index
    %4 = vector.load %arg2[%c0_3, %c0_4] : memref<8x2xf32, #tpu.memory_space<vmem>>, vector<8x2xf32>
    %c0_5 = arith.constant 0 : index
    %c0_6 = arith.constant 0 : index
    %5 = vector.load %arg3[%c0_5, %c0_6] : memref<1x2xf32, #tpu.memory_space<vmem>>, vector<1x2xf32>
    %c0_7 = arith.constant 0 : index
    %c0_8 = arith.constant 0 : index
    %6 = vector.load %arg4[%c0_7, %c0_8] : memref<2x8xf32, #tpu.memory_space<vmem>>, vector<2x8xf32>
    %c0_9 = arith.constant 0 : index
    %c0_10 = arith.constant 0 : index
    %7 = vector.load %arg5[%c0_9, %c0_10] : memref<1x8xf32, #tpu.memory_space<vmem>>, vector<1x8xf32>
    %cst_11 = arith.constant dense<0.000000e+00> : vector<2x2xf32>
    %8 = tpu.matmul %3, %4, %cst_11 {dimension_numbers = #tpu.dot_dimension_numbers<[1], [0], [0], [1], [0, 0, 1, 1], [], []>} : vector<2x8xf32>, vector<8x2xf32>, vector<2x2xf32> -> vector<2x2xf32>
    %9 = vector.broadcast %5 : vector<1x2xf32> to vector<2x2xf32>
    %10 = arith.addf %8, %9 : vector<2x2xf32>
    %cst_12 = arith.constant 0.000000e+00 : f32
    %11 = vector.broadcast %cst_12 : f32 to vector<2x2xf32>
    %12 = arith.maximumf %10, %11 : vector<2x2xf32>
    %cst_13 = arith.constant dense<0.000000e+00> : vector<2x8xf32>
    %13 = tpu.matmul %12, %6, %cst_13 {dimension_numbers = #tpu.dot_dimension_numbers<[1], [0], [0], [1], [0, 0, 1, 1], [], []>} : vector<2x2xf32>, vector<2x8xf32>, vector<2x8xf32> -> vector<2x8xf32>
    %14 = vector.broadcast %7 : vector<1x8xf32> to vector<2x8xf32>
    %15 = arith.addf %13, %14 : vector<2x8xf32>
    %16 = arith.negf %15 : vector<2x8xf32>
    %17 = math.exp %16 : vector<2x8xf32>
    %cst_14 = arith.constant 1.000000e+00 : f32
    %18 = vector.broadcast %cst_14 : f32 to vector<2x8xf32>
    %19 = arith.addf %18, %17 : vector<2x8xf32>
    %20 = arith.divf %18, %19 : vector<2x8xf32>
    %21 = vector.shape_cast %20 : vector<2x8xf32> to vector<2x8x1xf32>
    %22 = vector.broadcast %21 : vector<2x8x1xf32> to vector<2x8x196xf32>
    %23 = arith.mulf %0, %22 : vector<2x8x196xf32>
    %c0_15 = arith.constant 0 : index
    %c0_16 = arith.constant 0 : index
    %c0_17 = arith.constant 0 : index
    %24 = vector.load %arg6[%c0_15, %c0_16, %c0_17] : memref<2x8x196xf32, #tpu.memory_space<vmem>>, vector<2x8x196xf32>
    tpu.vector_store %arg6[%c0_15, %c0_16, %c0_17], %23 {strides = array<i32>} : memref<2x8x196xf32, #tpu.memory_space<vmem>>, vector<2x8x196xf32>,
    return
  }
  func.func @transform_0(%arg0: i32) -> (i32, i32, i32) {
    %c0_i32 = arith.constant 0 : i32
    %c0_i32_0 = arith.constant 0 : i32
    %c0_i32_1 = arith.constant 0 : i32
    return %arg0, %c0_i32, %c0_i32_0 : i32, i32, i32
  }
  func.func @transform_1(%arg0: i32) -> (i32, i32) {
    %c0_i32 = arith.constant 0 : i32
    %c0_i32_0 = arith.constant 0 : i32
    %c0_i32_1 = arith.constant 0 : i32
    return %c0_i32, %c0_i32_0 : i32, i32
  }
  func.func @transform_2(%arg0: i32) -> (i32, i32) {
    %c0_i32 = arith.constant 0 : i32
    %c0_i32_0 = arith.constant 0 : i32
    %c0_i32_1 = arith.constant 0 : i32
    return %c0_i32, %c0_i32_0 : i32, i32
  }
  func.func @transform_3(%arg0: i32) -> (i32, i32) {
    %c0_i32 = arith.constant 0 : i32
    %c0_i32_0 = arith.constant 0 : i32
    %c0_i32_1 = arith.constant 0 : i32
    return %c0_i32, %c0_i32_0 : i32, i32
  }
  func.func @transform_4(%arg0: i32) -> (i32, i32) {
    %c0_i32 = arith.constant 0 : i32
    %c0_i32_0 = arith.constant 0 : i32
    %c0_i32_1 = arith.constant 0 : i32
    return %c0_i32, %c0_i32_0 : i32, i32
  }
  func.func @transform_5(%arg0: i32) -> (i32, i32, i32) {
    %c0_i32 = arith.constant 0 : i32
    %c0_i32_0 = arith.constant 0 : i32
    %c0_i32_1 = arith.constant 0 : i32
    return %arg0, %c0_i32, %c0_i32_0 : i32, i32, i32
  }
}

</mosaic_0001>

<llo_original>
// kernel: tpu_custom_call.1
$region0: #{tpu_custom_call.1}
  #allocation0 [shape = 'u32[]', space=smem, size = 0x4, offset = 0x4, fixed_abs, tag = 'smem constant byte address 0x4 - core index']
  #allocation1 [shape = 'u32[72,128]{1,0:T(1,128)}', space=vmem, size = 0x9000, scoped, tag = 'internal scratch']
  %s0 = inlined_call_operand.hbm [shape: f32[2,8,196], index: 0, kind: input, shape index: {}]
  %s1 = inlined_call_operand.vmem [shape: f32[8,2], index: 1, kind: input, shape index: {}]
  %s2 = inlined_call_operand.vmem [shape: f32[1,2], index: 2, kind: input, shape index: {}]
  %s3 = inlined_call_operand.vmem [shape: f32[2,8], index: 3, kind: input, shape index: {}]
  %s4 = inlined_call_operand.vmem [shape: f32[1,8], index: 4, kind: input, shape index: {}]
  %s5 = inlined_call_operand.hbm [shape: f32[2,8,196], index: 5, kind: output, shape index: {}]
  %s6 = sld [smem:[#allocation0]]
  $region34: #{tpu_custom_call.1} parent=0
    _
  %s8 = ssub.s32 1, %s6
  %s9 = scalar_select 0, %s8, %s6
  $region1: #{tpu_custom_call.1} parent=0
    #allocation2 [shape = 'u8[16384]{0}', space=vmem, size = 0x4000, scoped, tag = 'input window, operand 0, single buffered']
    #allocation3 [shape = 's32[1]{0}', space=sflag, size = 0x4, scoped, tag = 'scoped memory for tpu_custom_call.1']
    #allocation4 [shape = 's32[1]{0}', space=sflag, size = 0x4, scoped, tag = 'scoped memory for tpu_custom_call.1']
    #allocation5 [shape = 'u8[16384]{0}', space=vmem, size = 0x4000, scoped, tag = 'output window, operand 0, single buffered']
    %10 = vsyncpa [#allocation3], 0
    %11 = vsyncpa [#allocation4], 0
    // Predicated region
    $region2: #{tpu_custom_call.1} parent=1 // pred_check
      _
    $region3: #{tpu_custom_call.1} parent=1 // pred_check_branch
      %13 = sbr.rel (0) target = $region5
    $region4: #{tpu_custom_call.1} parent=1 // pred_region
      %15 = vsyncadd [#allocation3], 0
      %s16 = sshll.u32 %s0, 4
      %s17 = int_to_ptr.hbm [resolvable:$true] %s16
      %s18 = sshll.u32 [#allocation2], 4
      %s19 = int_to_ptr.vmem [resolvable:$true] %s18
      %24 = dma.hbm_to_vmem [thread:$0]  %s17, 512, %s19, [#allocation3], 256, 256, 16
    $region5: #{tpu_custom_call.1} parent=1 // pred_fallthru
      _
    // Predicated region
    $region6: #{tpu_custom_call.1} parent=1 // pred_check
      _
    $region7: #{tpu_custom_call.1} parent=1 // pred_check_branch
      %26 = sbr.rel (0) target = $region9
    $region8: #{tpu_custom_call.1} parent=1 // pred_region
      _
    $region9: #{tpu_custom_call.1} parent=1 // pred_fallthru
      _
    // Predicated region
    $region10: #{tpu_custom_call.1} parent=1 // pred_check
      _
    $region11: #{tpu_custom_call.1} parent=1 // pred_check_branch
      %28 = sbr.rel (0) target = $region13
    $region12: #{tpu_custom_call.1} parent=1 // pred_region
      _
    $region13: #{tpu_custom_call.1} parent=1 // pred_fallthru
      _
    // Predicated region
    $region14: #{tpu_custom_call.1} parent=1 // pred_check
      _
    $region15: #{tpu_custom_call.1} parent=1 // pred_check_branch
      %30 = sbr.rel (0) target = $region17
    $region16: #{tpu_custom_call.1} parent=1 // pred_region
      _
    $region17: #{tpu_custom_call.1} parent=1 // pred_fallthru
      _
    // Predicated region
    $region18: #{tpu_custom_call.1} parent=1 // pred_check
      _
    $region19: #{tpu_custom_call.1} parent=1 // pred_check_branch
      %32 = sbr.rel (0) target = $region21
    $region20: #{tpu_custom_call.1} parent=1 // pred_region
      _
    $region21: #{tpu_custom_call.1} parent=1 // pred_fallthru
      _
    // Predicated region
    $region22: #{tpu_custom_call.1} parent=1 // pred_check
      _
    $region23: #{tpu_custom_call.1} parent=1 // pred_check_branch
      %34 = sbr.rel (0) target = $region25
    $region24: #{tpu_custom_call.1} parent=1 // pred_region
      %36 = dma.done [#allocation3], 512
    $region25: #{tpu_custom_call.1} parent=1 // pred_fallthru
      _
    %v37 = vld [vmem:[#allocation2] sm:$0xff]
    %v38 = vld [vmem:[#allocation2 + $0x8] sm:$0xff]
    %v39 = vld [vmem:[#allocation2 + $0x10] sm:$0xff]
    %v40 = vld [vmem:[#allocation2 + $0x18] sm:$0xff]
    %vm41 = vcmask 556032
    %v42 = vsel %vm41, %v38, 0.0
    %v43 = vadd.f32 %v37, %v42
    %44 = vadd.xlane.f32.xlu0 %v43
    %v45 = vpop.xlane.xlu0 %44
    %v46 = vsel %vm41, %v40, 0.0
    %v47 = vadd.f32 %v39, %v46
    %48 = vadd.xlane.f32.xlu0 %v47
    %v49 = vpop.xlane.xlu0 %48
    %v50 = vmul.f32 %v45, 0.0051020407
    %v51 = vmul.f32 %v49, 0.0051020407
    %v52 = vld [vmem:[%s1] sm:$0xff]
    %v53 = vld [vmem:[%s2] sm:$0x1]
    %v54 = vld [vmem:[%s3] sm:$0x3]
    %v55 = vld [vmem:[%s4] sm:$0x1]
    %v57 = vperm.slane %v53, 0
    %v61 = vlaneseq
    %v62 = vand.u32 %v61, 127
    %v63 = vperm.slane %v50, %v62
    %v64 = vperm.slane %v51, %v62
    %vm65 = vcmask 1041409
    %v66 = vsel %vm65, %v64, %v63
    %vm67 = vcmask 64512
    %v68 = vsel %vm67, %v66, 0
    %70 = vmatpush.msra.mxu0 0.0
    %71 = vmatpush.msra.mxu0 0.0
    %72 = vmatpush.msra.mxu0 0.0
    %73 = vmatpush.msra.mxu0 0.0
    %74 = vmatpush.msra.mxu0 0.0
    %75 = vmatpush.msra.mxu0 0.0
    %76 = vmatpush.msra.mxu0 0.0
    %77 = vmatpush.msra.mxu0 0.0
    %78 = vmatpush.msra.mxu0 0.0
    %79 = vmatpush.msra.mxu0 0.0
    %80 = vmatpush.msra.mxu0 0.0
    %81 = vmatpush.msra.mxu0 0.0
    %82 = vmatpush.msra.mxu0 0.0
    %83 = vmatpush.msra.mxu0 0.0
    %84 = vmatpush.msra.mxu0 0.0
    %85 = vmatpush.msra.mxu0 %v52
    %86 = vmatmul.f32.gmra.mxu0 %v68
    %v87 = vpop.f32.mrf.mxu0
    %v88 = vadd.f32 %v57, %v87
    %89 = vdwg.mxu0
    %v90 = vmax.f32 %v88, 0.0
    %v92 = vperm.slane %v55, 0
    %vm94 = vcmask 15360
    %v96 = vsel %vm94, %v90, 0
    %vm98 = vcmask 1041408
    %v100 = vsel %vm98, %v54, 0
    %102 = vmatpush.msra.mxu0 0.0
    %103 = vmatpush.msra.mxu0 0.0
    %104 = vmatpush.msra.mxu0 0.0
    %105 = vmatpush.msra.mxu0 0.0
    %106 = vmatpush.msra.mxu0 0.0
    %107 = vmatpush.msra.mxu0 0.0
    %108 = vmatpush.msra.mxu0 0.0
    %109 = vmatpush.msra.mxu0 0.0
    %110 = vmatpush.msra.mxu0 0.0
    %111 = vmatpush.msra.mxu0 0.0
    %112 = vmatpush.msra.mxu0 0.0
    %113 = vmatpush.msra.mxu0 0.0
    %114 = vmatpush.msra.mxu0 0.0
    %115 = vmatpush.msra.mxu0 0.0
    %116 = vmatpush.msra.mxu0 0.0
    %117 = vmatpush.msra.mxu0 %v100
    %118 = vmatmul.f32.gmra.mxu0 %v96
    %v119 = vpop.f32.mrf.mxu0
    %v120 = vadd.f32 %v92, %v119
    %121 = vdwg.mxu0
    %v122 = vxor.u32 %v120, 2147483648
    %v123 = vmul.f32 %v122, 1.442695
    %v124 = vpow.pop %v123
    %v125 = vadd.f32 %v124, 1.0
    %v126 = vrcp.pop %v125
    %v127 = vmul.f32 %v125, %v126
    %v128 = vsub.f32 1.0, %v127
    %v129 = vmul.f32 %v126, %v128
    %v130 = vadd.f32 %v126, %v129
    %vm131 = vweird.f32 %v125
    %vm132 = vweird.f32 %v126
    %vm133 = vmor %vm131, %vm132
    %v134 = vsel %vm133, %v126, %v130
    %v135 = vand.u32 2147483647, %v125
    %vm136 = vcmp.eq.f32.partialorder %v135, 8.507059e+37
    %v137 = vand.u32 %v125, 2147483648
    %v138 = vor.u32 1.1754944e-38, %v137
    %v139 = vsel %vm136, %v138, %v134
    %v140 = vmul.f32 1.0, %v139
    %v141 = vperm.slane %v140, 0
    %v142 = vlaneseq
    %v143 = vshrl.u32 %v142, 7
    %145 = vset.pattern.permute.xlu0 %v143
    %146 = vperm.xlu0 %145, %v141
    %v147 = vpop.permute.xlu0 %146
    %v148 = vperm.slane %v140, 1
    %v149 = vlaneseq
    %v150 = vshrl.u32 %v149, 7
    %152 = vset.pattern.permute.xlu0 %v150
    %153 = vperm.xlu0 %152, %v148
    %v154 = vpop.permute.xlu0 %153
    %v155 = vmul.f32 %v37, %v147
    %v156 = vmul.f32 %v38, %v147
    %v157 = vmul.f32 %v39, %v154
    %v158 = vmul.f32 %v40, %v154
    %159 = vst [vmem:[#allocation5] sm:$0xff] %v155
    %160 = vst.msk [vmem:[#allocation5 + $0x8] sm:$0xff] %vm41, %v156
    %161 = vst [vmem:[#allocation5 + $0x10] sm:$0xff] %v157
    %162 = vst.msk [vmem:[#allocation5 + $0x18] sm:$0xff] %vm41, %v158
    // Predicated region
    $region26: #{tpu_custom_call.1} parent=1 // pred_check
      _
    $region27: #{tpu_custom_call.1} parent=1 // pred_check_branch
      %164 = sbr.rel (0) target = $region29
    $region28: #{tpu_custom_call.1} parent=1 // pred_region
      %166 = vsyncadd [#allocation4], 0
      %s167 = sshll.u32 [#allocation5], 4
      %s168 = int_to_ptr.vmem [resolvable:$true] %s167
      %s169 = sshll.u32 %s5, 4
      %s170 = int_to_ptr.hbm [resolvable:$true] %s169
      %175 = dma.vmem_to_hbm [thread:$0]  %s168, 512, %s170, [#allocation4], 256, 256, 16
    $region29: #{tpu_custom_call.1} parent=1 // pred_fallthru
      _
    // Predicated region
    $region30: #{tpu_custom_call.1} parent=1 // pred_check
      _
    $region31: #{tpu_custom_call.1} parent=1 // pred_check_branch
      %177 = sbr.rel (0) target = $region33
    $region32: #{tpu_custom_call.1} parent=1 // pred_region
      %179 = dma.done [#allocation4], 512
    $region33: #{tpu_custom_call.1} parent=1 // pred_fallthru
      _
    %180 = vsyncpa [#allocation3], 1
    %181 = vsyncpa [#allocation4], 1

</llo_original>
